<compile_context>
chip_gen: v7x
topology: tpu7x:2x2x1
jax: 0.10.0
libtpu: 0.0.40
codegen_flags: <defaults>
</compile_context>

<pallas_src>
import functools

import jax
import jax.numpy as jnp
from jax.experimental import pallas as pl
from jax.experimental.pallas import tpu as pltpu


def _round_up(x, m):
    return ((x + m - 1) // m) * m


def _ml_loss_kernel(logp_ref, tgt_ref, loss_ref, cnt_ref, g_acc_ref, *,
                    penalize, rows, tm, tv):
    """Grid = (row_tiles, vocab_chunks).

    logp_ref : (tm, tv) block of log-probs (source dtype)
    tgt_ref  : (tm, 1)  block of int32 targets
    loss_ref : (1, 8, 128) per-row-tile partial loss (broadcast scalar)
    cnt_ref  : (1, 8, 128) per-row-tile partial mask count (broadcast scalar)
    g_acc_ref: (tm, 1) VMEM scratch - gathered log-probs accumulated over
               vocab chunks for the current row tile.
    """
    i = pl.program_id(0)           # row-tile index (parallel)
    k = pl.program_id(1)           # vocab-chunk index (reduction, last axis)
    nk = pl.num_programs(1)

    logp = logp_ref[...].astype(jnp.float32)            # (tm, tv)
    tgt = tgt_ref[...]                                   # (tm, 1) int32

    # gather(-1, target) restricted to this vocab chunk via one-hot select.
    # Out-of-range (ragged V) lanes never match, so padded garbage is ignored.
    col = jax.lax.broadcasted_iota(jnp.int32, (tm, tv), 1)
    tgt_local = tgt - k * tv                             # (tm, 1)
    g_part = jnp.sum(jnp.where(col == tgt_local, logp, 0.0),
                     axis=-1, keepdims=True)             # (tm, 1)

    @pl.when(k == 0)
    def _():
        g_acc_ref[...] = jnp.zeros_like(g_acc_ref)

    g_acc_ref[...] += g_part

    @pl.when(k == nk - 1)
    def _():
        g = g_acc_ref[...]                               # (tm, 1) f32
        valid = tgt > 1                                  # binary mask (th_mask=1)
        if rows % tm != 0:
            # Ragged last row tile: drop rows past the true row count.
            row = jax.lax.broadcasted_iota(jnp.int32, (tm, 1), 0) + i * tm
            in_bounds = row < rows
            g = jnp.where(in_bounds, g, 0.0)
            valid = jnp.logical_and(valid, in_bounds)
        mask = valid.astype(jnp.float32)

        loss = jnp.sum(-g * mask)
        if penalize:
            # neg_entropy = sum(exp(g) * g) over real rows (padded rows give 0)
            loss = loss + jnp.float32(penalize) * jnp.sum(jnp.exp(g) * g)

        loss_ref[...] = jnp.full(loss_ref.shape, loss, jnp.float32)
        cnt_ref[...] = jnp.full(cnt_ref.shape, jnp.sum(mask), jnp.float32)


def ml_criterion_forward(logp, target, *, penalize=0.0, norm=True,
                         tm=512, tv=None):
    """Pallas implementation of MLCriterion.forward.

    logp   : (N, T, V) float log-probabilities (any float dtype)
    target : (N, T)    integer labels
    returns ({'final': loss, 'ml': loss}, {})   with loss a scalar f32
    """
    N, T, V = logp.shape
    target = target[:, :T]
    rows = N * T

    logp2 = logp.reshape(rows, V)                        # keep source dtype
    tgt2 = target.reshape(rows, 1).astype(jnp.int32)

    # Row tile: large (multiple of 8), capped near the row count.
    tm = max(8, _round_up(min(int(tm), rows), 8))
    # Vocab chunk: full V when it fits comfortably, else 128-aligned chunks.
    if tv is None:
        tv = V if V <= 2048 else 2048
    tv = V if int(tv) >= V else max(128, (int(tv) // 128) * 128)

    n_rt = pl.cdiv(rows, tm)
    n_vc = pl.cdiv(V, tv)

    kernel = functools.partial(_ml_loss_kernel, penalize=float(penalize),
                               rows=rows, tm=tm, tv=tv)

    out_loss, out_cnt = pl.pallas_call(
        kernel,
        out_shape=(jax.ShapeDtypeStruct((n_rt, 8, 128), jnp.float32),
                   jax.ShapeDtypeStruct((n_rt, 8, 128), jnp.float32)),
        grid_spec=pltpu.PrefetchScalarGridSpec(
            num_scalar_prefetch=0,
            grid=(n_rt, n_vc),
            in_specs=[
                pl.BlockSpec((tm, tv), lambda i, k: (i, k)),
                pl.BlockSpec((tm, 1), lambda i, k: (i, 0)),
            ],
            out_specs=[
                pl.BlockSpec((1, 8, 128), lambda i, k: (i, 0, 0)),
                pl.BlockSpec((1, 8, 128), lambda i, k: (i, 0, 0)),
            ],
            scratch_shapes=[pltpu.VMEM((tm, 1), jnp.float32)],
        ),
        compiler_params=pltpu.CompilerParams(
            dimension_semantics=("parallel", "arbitrary"),
            vmem_limit_bytes=48 * 1024 * 1024,
        ),
    )(logp2, tgt2)

    loss = jnp.sum(out_loss[:, 0, 0])
    if norm:
        # Matches the reference: division by sum(mask) (inf/NaN if all-masked).
        loss = loss / jnp.sum(out_cnt[:, 0, 0])
    return ({'final': loss, 'ml': loss}, {})


def _reference_forward(logp, target, *, penalize=0.0, norm=True):
    """Pure-JAX reference matching the PyTorch code."""
    N, T, V = logp.shape
    target = target[:, :T]
    mask = (target > 1).astype(jnp.float32)
    lp = logp.reshape(-1, V).astype(jnp.float32)
    tg = target.reshape(-1)
    mk = mask.reshape(-1)
    g = jnp.take_along_axis(lp, tg[:, None], axis=1)[:, 0]
    if penalize:
        out = jnp.sum(-g * mk) + penalize * jnp.sum(jnp.exp(g) * g)
    else:
        out = jnp.sum(-g * mk)
    if norm:
        out = out / jnp.sum(mask)
    return out


if __name__ == "__main__":
    key = jax.random.PRNGKey(0)
    k1, k2, k3, k4 = jax.random.split(key, 4)

    # Case 1: shapes implied by the module (batch=2, seq=8, vocab=32).
    N, T, V = 2, 8, 32
    logp = jax.nn.log_softmax(
        jax.random.normal(k1, (N, T, V), dtype=jnp.float32), axis=-1)
    target = jax.random.randint(k2, (N, T), 0, V, dtype=jnp.int32)

    outs, _ = ml_criterion_forward(logp, target, penalize=0.0, norm=True)
    loss = jax.block_until_ready(outs['final'])
    ref = _reference_forward(logp, target, penalize=0.0, norm=True)
    assert jnp.allclose(loss, ref, rtol=1e-5, atol=1e-5), (loss, ref)

    # penalize-confidence branch
    outs_p, _ = ml_criterion_forward(logp, target, penalize=0.1, norm=True)
    loss_p = jax.block_until_ready(outs_p['final'])
    ref_p = _reference_forward(logp, target, penalize=0.1, norm=True)
    assert jnp.allclose(loss_p, ref_p, rtol=1e-5, atol=1e-5), (loss_p, ref_p)

    # Case 2: exercise ragged row tiles + vocab chunking (forced small tiles).
    N2, T2, V2 = 2, 5, 300
    logp_b = jax.nn.log_softmax(
        jax.random.normal(k3, (N2, T2, V2), dtype=jnp.float32), axis=-1)
    target_b = jax.random.randint(k4, (N2, T2), 0, V2, dtype=jnp.int32)
    outs2, _ = ml_criterion_forward(logp_b, target_b, penalize=0.1, norm=True,
                                    tm=8, tv=128)
    loss2 = jax.block_until_ready(outs2['final'])
    ref2 = _reference_forward(logp_b, target_b, penalize=0.1, norm=True)
    assert jnp.allclose(loss2, ref2, rtol=1e-5, atol=1e-5), (loss2, ref2)

    print("KERNEL_OK")
</pallas_src>

<mosaic_0001>
module attributes {stable_mosaic.version = 11 : i64} {
  func.func @_ml_loss_kernel(%arg0: i32, %arg1: i32, %arg2: memref<16x32xf32, #tpu.memory_space<vmem>>, %arg3: memref<16x1xi32, #tpu.memory_space<vmem>>, %arg4: memref<1x8x128xf32, #tpu.memory_space<vmem>>, %arg5: memref<1x8x128xf32, #tpu.memory_space<vmem>>, %arg6: memref<16x1xf32, #tpu.memory_space<vmem>>) attributes {dimension_semantics = [#tpu.dimension_semantics<parallel>, #tpu.dimension_semantics<arbitrary>], iteration_bounds = array<i64: 1, 1>, scalar_prefetch = 0 : i64, scratch_operands = 1 : i64, tpu.core_type = #tpu.core_type<tc>, window_params = [{transform_indices = @transform_0, window_bounds = array<i64: 16, 32>}, {transform_indices = @transform_1, window_bounds = array<i64: 16, 1>}, {transform_indices = @transform_2, window_bounds = array<i64: 1, 8, 128>}, {transform_indices = @transform_3, window_bounds = array<i64: 1, 8, 128>}]} {
    %c0 = arith.constant 0 : index
    %c0_0 = arith.constant 0 : index
    %0 = vector.load %arg2[%c0, %c0_0] : memref<16x32xf32, #tpu.memory_space<vmem>>, vector<16x32xf32>
    %c0_1 = arith.constant 0 : index
    %c0_2 = arith.constant 0 : index
    %1 = vector.load %arg3[%c0_1, %c0_2] : memref<16x1xi32, #tpu.memory_space<vmem>>, vector<16x1xi32>
    %2 = tpu.iota {dimensions = array<i32: 1>} : vector<16x32xi32>
    %c32_i32 = arith.constant 32 : i32
    %3 = arith.muli %arg1, %c32_i32 : i32
    %4 = vector.broadcast %3 : i32 to vector<16x1xi32>
    %5 = arith.subi %1, %4 : vector<16x1xi32>
    %6 = vector.broadcast %5 : vector<16x1xi32> to vector<16x32xi32>
    %7 = arith.cmpi eq, %2, %6 : vector<16x32xi32>
    %cst = arith.constant 0.000000e+00 : f32
    %8 = vector.broadcast %cst : f32 to vector<16x32xf32>
    %9 = arith.select %7, %0, %8 : vector<16x32xi1>, vector<16x32xf32>
    %cst_3 = arith.constant dense<0.000000e+00> : vector<16xf32>
    %10 = vector.multi_reduction <add>, %9, %cst_3 [1] : vector<16x32xf32> to vector<16xf32>
    %11 = vector.shape_cast %10 : vector<16xf32> to vector<16x1xf32>
    %c0_i32 = arith.constant 0 : i32
    %12 = arith.cmpi eq, %arg1, %c0_i32 : i32
    %13 = arith.extui %12 : i1 to i32
    %c0_i32_4 = arith.constant 0 : i32
    %14 = arith.cmpi ne, %13, %c0_i32_4 : i32
    scf.if %14 {
      %cst_11 = arith.constant 0.000000e+00 : f32
      %21 = vector.broadcast %cst_11 : f32 to vector<16x1xf32>
      %c0_12 = arith.constant 0 : index
      %c0_13 = arith.constant 0 : index
      %22 = vector.load %arg6[%c0_12, %c0_13] : memref<16x1xf32, #tpu.memory_space<vmem>>, vector<16x1xf32>
      tpu.vector_store %arg6[%c0_12, %c0_13], %21 {strides = array<i32>} : memref<16x1xf32, #tpu.memory_space<vmem>>, vector<16x1xf32>,
    } else {
    }
    %c0_5 = arith.constant 0 : index
    %c0_6 = arith.constant 0 : index
    %15 = vector.load %arg6[%c0_5, %c0_6] : memref<16x1xf32, #tpu.memory_space<vmem>>, vector<16x1xf32>
    %16 = arith.addf %15, %11 : vector<16x1xf32>
    %c0_7 = arith.constant 0 : index
    %c0_8 = arith.constant 0 : index
    %17 = vector.load %arg6[%c0_7, %c0_8] : memref<16x1xf32, #tpu.memory_space<vmem>>, vector<16x1xf32>
    tpu.vector_store %arg6[%c0_7, %c0_8], %16 {strides = array<i32>} : memref<16x1xf32, #tpu.memory_space<vmem>>, vector<16x1xf32>,
    %c0_i32_9 = arith.constant 0 : i32
    %18 = arith.cmpi eq, %arg1, %c0_i32_9 : i32
    %19 = arith.extui %18 : i1 to i32
    %c0_i32_10 = arith.constant 0 : i32
    %20 = arith.cmpi ne, %19, %c0_i32_10 : i32
    scf.if %20 {
      %c0_11 = arith.constant 0 : index
      %c0_12 = arith.constant 0 : index
      %21 = vector.load %arg6[%c0_11, %c0_12] : memref<16x1xf32, #tpu.memory_space<vmem>>, vector<16x1xf32>
      %c1_i32 = arith.constant 1 : i32
      %22 = vector.broadcast %c1_i32 : i32 to vector<16x1xi32>
      %23 = arith.cmpi sgt, %1, %22 : vector<16x1xi32>
      %24 = arith.extui %23 : vector<16x1xi1> to vector<16x1xi32>
      %25 = arith.sitofp %24 : vector<16x1xi32> to vector<16x1xf32>
      %cst_13 = arith.constant 0.000000e+00 : f32
      %26 = vector.broadcast %cst_13 : f32 to vector<16x1xf32>
      %27 = arith.subf %26, %21 : vector<16x1xf32>
      %28 = arith.mulf %27, %25 : vector<16x1xf32>
      %29 = vector.shape_cast %28 : vector<16x1xf32> to vector<1x16x1xf32>
      %cst_14 = arith.constant dense<0.000000e+00> : vector<1xf32>
      %30 = vector.multi_reduction <add>, %29, %cst_14 [1, 2] : vector<1x16x1xf32> to vector<1xf32>
      %31 = vector.shape_cast %30 : vector<1xf32> to vector<1x1x1xf32>
      %32 = vector.extract %31[0, 0, 0] : f32 from vector<1x1x1xf32>
      %33 = vector.broadcast %32 : f32 to vector<1x8x128xf32>
      %c0_15 = arith.constant 0 : index
      %c0_16 = arith.constant 0 : index
      %c0_17 = arith.constant 0 : index
      %34 = vector.load %arg4[%c0_15, %c0_16, %c0_17] : memref<1x8x128xf32, #tpu.memory_space<vmem>>, vector<1x8x128xf32>
      tpu.vector_store %arg4[%c0_15, %c0_16, %c0_17], %33 {strides = array<i32>} : memref<1x8x128xf32, #tpu.memory_space<vmem>>, vector<1x8x128xf32>,
      %35 = vector.shape_cast %25 : vector<16x1xf32> to vector<1x16x1xf32>
      %cst_18 = arith.constant dense<0.000000e+00> : vector<1xf32>
      %36 = vector.multi_reduction <add>, %35, %cst_18 [1, 2] : vector<1x16x1xf32> to vector<1xf32>
      %37 = vector.shape_cast %36 : vector<1xf32> to vector<1x1x1xf32>
      %38 = vector.extract %37[0, 0, 0] : f32 from vector<1x1x1xf32>
      %39 = vector.broadcast %38 : f32 to vector<1x8x128xf32>
      %c0_19 = arith.constant 0 : index
      %c0_20 = arith.constant 0 : index
      %c0_21 = arith.constant 0 : index
      %40 = vector.load %arg5[%c0_19, %c0_20, %c0_21] : memref<1x8x128xf32, #tpu.memory_space<vmem>>, vector<1x8x128xf32>
      tpu.vector_store %arg5[%c0_19, %c0_20, %c0_21], %39 {strides = array<i32>} : memref<1x8x128xf32, #tpu.memory_space<vmem>>, vector<1x8x128xf32>,
    } else {
    }
    return
  }
  func.func @transform_0(%arg0: i32, %arg1: i32) -> (i32, i32) {
    %c0_i32 = arith.constant 0 : i32
    return %arg0, %arg1 : i32, i32
  }
  func.func @transform_1(%arg0: i32, %arg1: i32) -> (i32, i32) {
    %c0_i32 = arith.constant 0 : i32
    %c0_i32_0 = arith.constant 0 : i32
    return %arg0, %c0_i32 : i32, i32
  }
  func.func @transform_2(%arg0: i32, %arg1: i32) -> (i32, i32, i32) {
    %c0_i32 = arith.constant 0 : i32
    %c0_i32_0 = arith.constant 0 : i32
    %c0_i32_1 = arith.constant 0 : i32
    return %arg0, %c0_i32, %c0_i32_0 : i32, i32, i32
  }
  func.func @transform_3(%arg0: i32, %arg1: i32) -> (i32, i32, i32) {
    %c0_i32 = arith.constant 0 : i32
    %c0_i32_0 = arith.constant 0 : i32
    %c0_i32_1 = arith.constant 0 : i32
    return %arg0, %c0_i32, %c0_i32_0 : i32, i32, i32
  }
}

</mosaic_0001>

<llo_original>
// kernel: tpu_custom_call.1
$region0: #{tpu_custom_call.1}
  #allocation0 [shape = 'u32[]', space=smem, size = 0x4, offset = 0x4, fixed_abs, tag = 'smem constant byte address 0x4 - core index']
  #allocation1 [shape = 'u32[144,128]{1,0:T(1,128)}', space=vmem, size = 0x12000, scoped, tag = 'internal scratch']
  #allocation2 [shape = 'f32[16,1]{1,0:T(8,128)}', space=vmem, size = 0x2000, scoped, tag = 'scratch operand']
  %s0 = inlined_call_operand.vmem [shape: f32[16,32], index: 0, kind: input, shape index: {}]
  %s1 = inlined_call_operand.vmem [shape: s32[16,1], index: 1, kind: input, shape index: {}]
  %s2 = inlined_call_operand.hbm [shape: f32[1,8,128], index: 2, kind: output, shape index: {0}]
  %s3 = inlined_call_operand.hbm [shape: f32[1,8,128], index: 3, kind: output, shape index: {1}]
  %4 = xla_tuple %s2, %s3
  %s5 = sld [smem:[#allocation0]]
  $region34: #{tpu_custom_call.1} parent=0
    _
  %s7 = ssub.s32 1, %s5
  %s8 = scalar_select 0, %s7, %s5
  $region1: #{tpu_custom_call.1} parent=0
    #allocation3 [shape = 'u8[4096]{0}', space=vmem, size = 0x1000, scoped, tag = 'output window, operand 0, single buffered']
    #allocation4 [shape = 's32[1]{0}', space=sflag, size = 0x4, scoped, tag = 'scoped memory for tpu_custom_call.1']
    #allocation5 [shape = 'u8[4096]{0}', space=vmem, size = 0x1000, scoped, tag = 'output window, operand 1, single buffered']
    #allocation6 [shape = 's32[1]{0}', space=sflag, size = 0x4, scoped, tag = 'scoped memory for tpu_custom_call.1']
    %9 = vsyncpa [#allocation4], 0
    %10 = vsyncpa [#allocation6], 0
    // Predicated region
    $region2: #{tpu_custom_call.1} parent=1 // pred_check
      _
    $region3: #{tpu_custom_call.1} parent=1 // pred_check_branch
      %12 = sbr.rel (0) target = $region5
    $region4: #{tpu_custom_call.1} parent=1 // pred_region
      _
    $region5: #{tpu_custom_call.1} parent=1 // pred_fallthru
      _
    // Predicated region
    $region6: #{tpu_custom_call.1} parent=1 // pred_check
      _
    $region7: #{tpu_custom_call.1} parent=1 // pred_check_branch
      %14 = sbr.rel (0) target = $region9
    $region8: #{tpu_custom_call.1} parent=1 // pred_region
      _
    $region9: #{tpu_custom_call.1} parent=1 // pred_fallthru
      _
    %v15 = vld [vmem:[%s0] sm:$0xff]
    %v16 = vld [vmem:[%s0 + $0x8] sm:$0xff]
    %v17 = vld [vmem:[%s1] sm:$0xff]
    %v18 = vld [vmem:[%s1 + $0x8] sm:$0xff]
    %v19 = vlaneseq
    %v20 = vand.u32 %v19, 127
    %s21 = smul.u32 0, 32
    %v22 = vstv %s21
    %v23 = vsub.s32 %v17, %v22
    %v24 = vsub.s32 %v18, %v22
    %25 = vset.pattern.permute.xlu0 0
    %26 = vperm.xlu0 %25, %v23
    %v27 = vpop.permute.xlu0 %26
    %28 = vset.pattern.permute.xlu0 0
    %29 = vperm.xlu0 %28, %v24
    %v30 = vpop.permute.xlu0 %29
    %vm31 = vcmp.eq.s32.totalorder %v20, %v27
    %vm32 = vcmp.eq.s32.totalorder %v20, %v30
    %v33 = vsel %vm31, %v15, 0.0
    %v34 = vsel %vm32, %v16, 0.0
    %vm35 = vcmask 261120
    %v36 = vsel %vm35, %v33, 0.0
    %37 = vadd.xlane.f32.xlu0 %v36
    %v38 = vpop.xlane.xlu0 %37
    %v39 = vsel %vm35, %v34, 0.0
    %40 = vadd.xlane.f32.xlu0 %v39
    %v41 = vpop.xlane.xlu0 %40
    %p42 = scmp.eq.s32.totalorder 0, 0
    // Predicated region
    $region10: #{tpu_custom_call.1} parent=1 // pred_check
      %p43 = pneg %p42
    $region11: #{tpu_custom_call.1} parent=1 // pred_check_branch
      %45 = sbr.rel (%p43) target = $region13
    $region12: #{tpu_custom_call.1} parent=1 // pred_region
      %vm46 = vcmask 7168
      %47 = vst.msk [vmem:[#allocation2] sm:$0xff] %vm46, 0.0
      %48 = vst.msk [vmem:[#allocation2 + $0x8] sm:$0xff] %vm46, 0.0
    $region13: #{tpu_custom_call.1} parent=1 // pred_fallthru
      _
    %v49 = vld [vmem:[#allocation2] sm:$0xff]
    %v50 = vld [vmem:[#allocation2 + $0x8] sm:$0xff]
    %v51 = vadd.f32 %v49, %v38
    %v52 = vadd.f32 %v50, %v41
    %vm53 = vcmask 7168
    %54 = vst.msk [vmem:[#allocation2] sm:$0xff] %vm53, %v51
    %55 = vst.msk [vmem:[#allocation2 + $0x8] sm:$0xff] %vm53, %v52
    // Predicated region
    $region14: #{tpu_custom_call.1} parent=1 // pred_check
      %p56 = pneg %p42
    $region15: #{tpu_custom_call.1} parent=1 // pred_check_branch
      %58 = sbr.rel (%p56) target = $region17
    $region16: #{tpu_custom_call.1} parent=1 // pred_region
      %v59 = vld [vmem:[#allocation2] sm:$0xff]
      %v60 = vld [vmem:[#allocation2 + $0x8] sm:$0xff]
      %vm61 = vcmp.gt.s32.totalorder %v17, 1
      %vm62 = vcmp.gt.s32.totalorder %v18, 1
      %v63 = vsel %vm61, 1, 0
      %v64 = vsel %vm62, 1, 0
      %v65 = vcvt.s32.f32 %v63
      %v66 = vcvt.s32.f32 %v64
      %v67 = vsub.f32 0.0, %v59
      %v68 = vsub.f32 0.0, %v60
      %v69 = vmul.f32 %v67, %v65
      %v70 = vmul.f32 %v68, %v66
      %v71 = vsel %vm53, %v69, 0.0
      %v72 = vsel %vm53, %v70, 0.0
      %v73 = vadd.f32 %v71, %v72
      %74 = vadd.xlane.f32.xlu0 %v73
      %v75 = vpop.xlane.xlu0 %74
      %v76 = vrot.slane %v75, 4
      %v77 = vadd.f32 %v75, %v76
      %v78 = vrot.slane %v77, 2
      %v79 = vadd.f32 %v77, %v78
      %v80 = vrot.slane %v79, 1
      %v81 = vadd.f32 %v79, %v80
      %s82 = vtos %v81
      %v83 = vstv %s82
      %84 = vst [vmem:[#allocation3] sm:$0xff] %v83
      %v85 = vsel %vm53, %v65, 0.0
      %v86 = vsel %vm53, %v66, 0.0
      %v87 = vadd.f32 %v85, %v86
      %88 = vadd.xlane.f32.xlu0 %v87
      %v89 = vpop.xlane.xlu0 %88
      %v90 = vrot.slane %v89, 4
      %v91 = vadd.f32 %v89, %v90
      %v92 = vrot.slane %v91, 2
      %v93 = vadd.f32 %v91, %v92
      %v94 = vrot.slane %v93, 1
      %v95 = vadd.f32 %v93, %v94
      %s96 = vtos %v95
      %v97 = vstv %s96
      %98 = vst [vmem:[#allocation5] sm:$0xff] %v97
    $region17: #{tpu_custom_call.1} parent=1 // pred_fallthru
      _
    // Predicated region
    $region18: #{tpu_custom_call.1} parent=1 // pred_check
      _
    $region19: #{tpu_custom_call.1} parent=1 // pred_check_branch
      %100 = sbr.rel (0) target = $region21
    $region20: #{tpu_custom_call.1} parent=1 // pred_region
      %s102 = ssub.s32 128, 128
      %103 = vsyncadd [#allocation4], %s102
      %s105 = sshll.u32 [#allocation3], 4
      %s106 = int_to_ptr.vmem [resolvable:$true] %s105
      %108 = dma.vmem_to_hbm [thread:$0]  %s106, 128, %s2, [#allocation4]
    $region21: #{tpu_custom_call.1} parent=1 // pred_fallthru
      _
    // Predicated region
    $region22: #{tpu_custom_call.1} parent=1 // pred_check
      _
    $region23: #{tpu_custom_call.1} parent=1 // pred_check_branch
      %110 = sbr.rel (0) target = $region25
    $region24: #{tpu_custom_call.1} parent=1 // pred_region
      %s112 = ssub.s32 128, 128
      %113 = vsyncadd [#allocation6], %s112
      %s115 = sshll.u32 [#allocation5], 4
      %s116 = int_to_ptr.vmem [resolvable:$true] %s115
      %118 = dma.vmem_to_hbm [thread:$0]  %s116, 128, %s3, [#allocation6]
    $region25: #{tpu_custom_call.1} parent=1 // pred_fallthru
      _
    // Predicated region
    $region26: #{tpu_custom_call.1} parent=1 // pred_check
      _
    $region27: #{tpu_custom_call.1} parent=1 // pred_check_branch
      %120 = sbr.rel (0) target = $region29
    $region28: #{tpu_custom_call.1} parent=1 // pred_region
      %121 = dma.done [#allocation4], 128
    $region29: #{tpu_custom_call.1} parent=1 // pred_fallthru
      _
    // Predicated region
    $region30: #{tpu_custom_call.1} parent=1 // pred_check
      _
    $region31: #{tpu_custom_call.1} parent=1 // pred_check_branch
      %123 = sbr.rel (0) target = $region33
    $region32: #{tpu_custom_call.1} parent=1 // pred_region
      %124 = dma.done [#allocation6], 128
    $region33: #{tpu_custom_call.1} parent=1 // pred_fallthru
      _
    %125 = vsyncpa [#allocation4], 1
    %126 = vsyncpa [#allocation6], 1

</llo_original>
